<compile_context>
chip_gen: v7x
topology: tpu7x:2x2x1
jax: 0.10.0
libtpu: 0.0.40
codegen_flags: <defaults>
</compile_context>

<pallas_src>
import functools

import jax
import jax.numpy as jnp
from jax.experimental import pallas as pl
from jax.experimental.pallas import tpu as pltpu

NEG_SLOPE = 0.01  # nn.LeakyReLU() default negative_slope


def _leaky_relu(x):
    # negative_slope < 1  =>  LeakyReLU(x) == max(x, slope * x)
    return jnp.maximum(x, NEG_SLOPE * x)


def _round_up(n, m):
    return ((n + m - 1) // m) * m


def _cdiv(a, b):
    return (a + b - 1) // b


def encoder_kernel(x_ref, w_ref, b_ref, out_ref, *, input_dim):
    """x_ref: [tb, input_dim]; w_ref: [3, F, F]; b_ref: [3, 1, F]; out_ref: [tb, F]."""
    x = x_ref[...]

    # Layer 1: only the first `input_dim` rows of the padded weight matter.
    # Static ref slice = free view; x itself is never feature-padded.
    h = jnp.dot(x, w_ref[0, :input_dim, :], preferred_element_type=jnp.float32)
    h = _leaky_relu(h + b_ref[0])

    # Layer 2 (padded lanes of h are exactly 0 and padded weight rows are 0).
    h = jnp.dot(h, w_ref[1], preferred_element_type=jnp.float32)
    h = _leaky_relu(h + b_ref[1])

    # Fused mean|var head: one matmul, one lane-dense (F-wide) unmasked store.
    out_ref[...] = (jnp.dot(h, w_ref[2], preferred_element_type=jnp.float32)
                    + b_ref[2]).astype(out_ref.dtype)


def encoder_forward(x, params, *, block_b=2048):
    """x: [B, input_dim] f32. Returns (mean, var), each [B, latent_dim]."""
    B, input_dim = x.shape
    latent_dim = params["latent_dim"]
    head_off = params["head_off"]
    w_all = params["w_all"]          # [3, F, F]; padded rows/cols are exactly zero
    b_all = params["b_all"]          # [3, 1, F]; padded lanes are exactly zero
    F = w_all.shape[-1]

    # Balanced batch tiling:
    #   * tile rows are a multiple of 8 (sublane granularity)
    #   * tiles are evenly sized (last tile is never ~all padding)
    #   * large batches get an even number (>=2) of tiles so v7x's two TensorCores
    #     both receive work via the "parallel" grid axis.
    n_tiles = max(1, _cdiv(B, block_b))
    if n_tiles == 1 and B >= 1024:
        n_tiles = 2
    if n_tiles > 1 and n_tiles % 2 == 1:
        n_tiles += 1
    tb = max(8, _round_up(_cdiv(B, n_tiles), 8))
    B_pad = tb * n_tiles

    # Pad ONLY the batch dim; features stay at native width (no padded-x HBM copy).
    x_pad = x if B_pad == B else jnp.pad(x, ((0, B_pad - B), (0, 0)))

    out = pl.pallas_call(
        functools.partial(encoder_kernel, input_dim=input_dim),
        out_shape=jax.ShapeDtypeStruct((B_pad, F), jnp.float32),
        grid=(n_tiles,),
        in_specs=[
            # x tile: last block dim equals the full array dim -> legal non-128 width.
            pl.BlockSpec((tb, input_dim), lambda i: (i, 0)),
            # Packed weights / biases: constant index_map -> stay VMEM-resident.
            pl.BlockSpec((3, F, F), lambda i: (0, 0, 0)),
            pl.BlockSpec((3, 1, F), lambda i: (0, 0, 0)),
        ],
        out_specs=pl.BlockSpec((tb, F), lambda i: (i, 0)),
        compiler_params=pltpu.CompilerParams(
            dimension_semantics=("parallel",)),      # shard batch tiles across TCs
    )(x_pad, w_all, b_all)

    # Both heads sit at lane-aligned offsets inside the packed output slab.
    mean = out[:B, :latent_dim]
    var = out[:B, head_off:head_off + latent_dim]
    return mean, var


def init_params(key, input_dim, hidden_dim, latent_dim):
    """PyTorch-style nn.Linear init; weights stored as [in, out] and packed lane-dense.

    Invariant relied on by the kernel: every padded row/col of w_all and every padded
    lane of b_all is EXACTLY zero, so un-padded x / hidden activations cannot pick up
    garbage from the padding.
    """
    ks = jax.random.split(key, 8)

    def lin(kw, kb, fan_in, fan_out):
        bound = 1.0 / (fan_in ** 0.5)
        w = jax.random.uniform(kw, (fan_in, fan_out), jnp.float32, -bound, bound)
        b = jax.random.uniform(kb, (fan_out,), jnp.float32, -bound, bound)
        return w, b

    w1, b1 = lin(ks[0], ks[1], input_dim, hidden_dim)
    w2, b2 = lin(ks[2], ks[3], hidden_dim, hidden_dim)
    wm, bm = lin(ks[4], ks[5], hidden_dim, latent_dim)
    wv, bv = lin(ks[6], ks[7], hidden_dim, latent_dim)

    # var head starts at a 64-lane-aligned offset -> cheap wrapper slices.
    head_off = _round_up(latent_dim, 64)
    # Single lane-dense padded width covering every feature dim + the fused head.
    F = _round_up(max(input_dim, hidden_dim, head_off + latent_dim), 128)

    w_all = jnp.zeros((3, F, F), jnp.float32)
    w_all = w_all.at[0, :input_dim, :hidden_dim].set(w1)
    w_all = w_all.at[1, :hidden_dim, :hidden_dim].set(w2)
    w_all = w_all.at[2, :hidden_dim, :latent_dim].set(wm)
    w_all = w_all.at[2, :hidden_dim, head_off:head_off + latent_dim].set(wv)

    b_all = jnp.zeros((3, 1, F), jnp.float32)
    b_all = b_all.at[0, 0, :hidden_dim].set(b1)
    b_all = b_all.at[1, 0, :hidden_dim].set(b2)
    b_all = b_all.at[2, 0, :latent_dim].set(bm)
    b_all = b_all.at[2, 0, head_off:head_off + latent_dim].set(bv)

    return {
        "w_all": w_all, "b_all": b_all, "head_off": head_off,
        "input_dim": input_dim, "hidden_dim": hidden_dim, "latent_dim": latent_dim,
        # Unpacked copies kept only for the pure-JAX reference.
        "w1": w1, "b1": b1, "w2": w2, "b2": b2,
        "wm": wm, "bm": bm, "wv": wv, "bv": bv,
    }


def encoder_ref(x, p):
    """Pure-JAX reference of the PyTorch forward for verification."""
    h1 = _leaky_relu(x @ p["w1"] + p["b1"][None, :])
    h2 = _leaky_relu(h1 @ p["w2"] + p["b2"][None, :])
    return h2 @ p["wm"] + p["bm"][None, :], h2 @ p["wv"] + p["bv"][None, :]


if __name__ == "__main__":
    input_dim, hidden_dim, latent_dim = 32, 32, 50

    key = jax.random.PRNGKey(0)
    kx, kp, kx2 = jax.random.split(key, 3)
    params = init_params(kp, input_dim, hidden_dim, latent_dim)

    # Case 1: small batch, single tile.
    B = 8
    x = jax.random.normal(kx, (B, input_dim), jnp.float32)
    mean, var = encoder_forward(x, params)
    jax.block_until_ready((mean, var))
    mean_ref, var_ref = encoder_ref(x, params)
    assert mean.shape == (B, latent_dim) and var.shape == (B, latent_dim)
    assert jnp.allclose(mean, mean_ref, atol=1e-4, rtol=1e-4)
    assert jnp.allclose(var, var_ref, atol=1e-4, rtol=1e-4)

    # Case 2: multi-tile grid (exercises batch padding + balanced even tiling).
    B2 = 40
    x2 = jax.random.normal(kx2, (B2, input_dim), jnp.float32)
    mean2, var2 = encoder_forward(x2, params, block_b=16)
    jax.block_until_ready((mean2, var2))
    mean2_ref, var2_ref = encoder_ref(x2, params)
    assert mean2.shape == (B2, latent_dim) and var2.shape == (B2, latent_dim)
    assert jnp.allclose(mean2, mean2_ref, atol=1e-4, rtol=1e-4)
    assert jnp.allclose(var2, var2_ref, atol=1e-4, rtol=1e-4)

    print("KERNEL_OK")
</pallas_src>

<mosaic_0001>
module attributes {stable_mosaic.version = 11 : i64} {
  func.func @encoder_kernel(%arg0: i32, %arg1: memref<8x32xf32, #tpu.memory_space<vmem>>, %arg2: memref<3x128x128xf32, #tpu.memory_space<vmem>>, %arg3: memref<3x1x128xf32, #tpu.memory_space<vmem>>, %arg4: memref<8x128xf32, #tpu.memory_space<vmem>>) attributes {dimension_semantics = [#tpu.dimension_semantics<parallel>], iteration_bounds = array<i64: 1>, scalar_prefetch = 0 : i64, scratch_operands = 0 : i64, tpu.core_type = #tpu.core_type<tc>, window_params = [{transform_indices = @transform_0, window_bounds = array<i64: 8, 32>}, {pipeline_mode = #tpu.pipeline_mode<synchronous>, transform_indices = @transform_1, window_bounds = array<i64: 3, 128, 128>}, {pipeline_mode = #tpu.pipeline_mode<synchronous>, transform_indices = @transform_2, window_bounds = array<i64: 3, 1, 128>}, {transform_indices = @transform_3, window_bounds = array<i64: 8, 128>}]} {
    %c0 = arith.constant 0 : index
    %c0_0 = arith.constant 0 : index
    %0 = vector.load %arg1[%c0, %c0_0] : memref<8x32xf32, #tpu.memory_space<vmem>>, vector<8x32xf32>
    %c0_1 = arith.constant 0 : index
    %c0_2 = arith.constant 0 : index
    %c0_3 = arith.constant 0 : index
    %1 = vector.load %arg2[%c0_1, %c0_2, %c0_3] : memref<3x128x128xf32, #tpu.memory_space<vmem>>, vector<1x32x128xf32>
    %2 = vector.shape_cast %1 : vector<1x32x128xf32> to vector<32x128xf32>
    %cst = arith.constant dense<0.000000e+00> : vector<8x128xf32>
    %3 = tpu.matmul %0, %2, %cst {dimension_numbers = #tpu.dot_dimension_numbers<[1], [0], [0], [1], [0, 0, 1, 1], [], []>} : vector<8x32xf32>, vector<32x128xf32>, vector<8x128xf32> -> vector<8x128xf32>
    %c0_4 = arith.constant 0 : index
    %c0_5 = arith.constant 0 : index
    %c0_6 = arith.constant 0 : index
    %4 = vector.load %arg3[%c0_4, %c0_5, %c0_6] : memref<3x1x128xf32, #tpu.memory_space<vmem>>, vector<1x1x128xf32>
    %5 = vector.shape_cast %4 : vector<1x1x128xf32> to vector<1x128xf32>
    %6 = vector.broadcast %5 : vector<1x128xf32> to vector<8x128xf32>
    %7 = arith.addf %3, %6 : vector<8x128xf32>
    %cst_7 = arith.constant 0.00999999977 : f32
    %8 = vector.broadcast %cst_7 : f32 to vector<8x128xf32>
    %9 = arith.mulf %8, %7 : vector<8x128xf32>
    %10 = arith.maximumf %7, %9 : vector<8x128xf32>
    %c1 = arith.constant 1 : index
    %c0_8 = arith.constant 0 : index
    %c0_9 = arith.constant 0 : index
    %11 = vector.load %arg2[%c1, %c0_8, %c0_9] : memref<3x128x128xf32, #tpu.memory_space<vmem>>, vector<1x128x128xf32>
    %12 = vector.shape_cast %11 : vector<1x128x128xf32> to vector<128x128xf32>
    %cst_10 = arith.constant dense<0.000000e+00> : vector<8x128xf32>
    %13 = tpu.matmul %10, %12, %cst_10 {dimension_numbers = #tpu.dot_dimension_numbers<[1], [0], [0], [1], [0, 0, 1, 1], [], []>} : vector<8x128xf32>, vector<128x128xf32>, vector<8x128xf32> -> vector<8x128xf32>
    %c1_11 = arith.constant 1 : index
    %c0_12 = arith.constant 0 : index
    %c0_13 = arith.constant 0 : index
    %14 = vector.load %arg3[%c1_11, %c0_12, %c0_13] : memref<3x1x128xf32, #tpu.memory_space<vmem>>, vector<1x1x128xf32>
    %15 = vector.shape_cast %14 : vector<1x1x128xf32> to vector<1x128xf32>
    %16 = vector.broadcast %15 : vector<1x128xf32> to vector<8x128xf32>
    %17 = arith.addf %13, %16 : vector<8x128xf32>
    %cst_14 = arith.constant 0.00999999977 : f32
    %18 = vector.broadcast %cst_14 : f32 to vector<8x128xf32>
    %19 = arith.mulf %18, %17 : vector<8x128xf32>
    %20 = arith.maximumf %17, %19 : vector<8x128xf32>
    %c2 = arith.constant 2 : index
    %c0_15 = arith.constant 0 : index
    %c0_16 = arith.constant 0 : index
    %21 = vector.load %arg2[%c2, %c0_15, %c0_16] : memref<3x128x128xf32, #tpu.memory_space<vmem>>, vector<1x128x128xf32>
    %22 = vector.shape_cast %21 : vector<1x128x128xf32> to vector<128x128xf32>
    %cst_17 = arith.constant dense<0.000000e+00> : vector<8x128xf32>
    %23 = tpu.matmul %20, %22, %cst_17 {dimension_numbers = #tpu.dot_dimension_numbers<[1], [0], [0], [1], [0, 0, 1, 1], [], []>} : vector<8x128xf32>, vector<128x128xf32>, vector<8x128xf32> -> vector<8x128xf32>
    %c2_18 = arith.constant 2 : index
    %c0_19 = arith.constant 0 : index
    %c0_20 = arith.constant 0 : index
    %24 = vector.load %arg3[%c2_18, %c0_19, %c0_20] : memref<3x1x128xf32, #tpu.memory_space<vmem>>, vector<1x1x128xf32>
    %25 = vector.shape_cast %24 : vector<1x1x128xf32> to vector<1x128xf32>
    %26 = vector.broadcast %25 : vector<1x128xf32> to vector<8x128xf32>
    %27 = arith.addf %23, %26 : vector<8x128xf32>
    %c0_21 = arith.constant 0 : index
    %c0_22 = arith.constant 0 : index
    %28 = vector.load %arg4[%c0_21, %c0_22] : memref<8x128xf32, #tpu.memory_space<vmem>>, vector<8x128xf32>
    tpu.vector_store %arg4[%c0_21, %c0_22], %27 {strides = array<i32>} : memref<8x128xf32, #tpu.memory_space<vmem>>, vector<8x128xf32>,
    return
  }
  func.func @transform_0(%arg0: i32) -> (i32, i32) {
    %c0_i32 = arith.constant 0 : i32
    %c0_i32_0 = arith.constant 0 : i32
    return %arg0, %c0_i32 : i32, i32
  }
  func.func @transform_1(%arg0: i32) -> (i32, i32, i32) {
    %c0_i32 = arith.constant 0 : i32
    %c0_i32_0 = arith.constant 0 : i32
    %c0_i32_1 = arith.constant 0 : i32
    %c0_i32_2 = arith.constant 0 : i32
    return %c0_i32, %c0_i32_0, %c0_i32_1 : i32, i32, i32
  }
  func.func @transform_2(%arg0: i32) -> (i32, i32, i32) {
    %c0_i32 = arith.constant 0 : i32
    %c0_i32_0 = arith.constant 0 : i32
    %c0_i32_1 = arith.constant 0 : i32
    %c0_i32_2 = arith.constant 0 : i32
    return %c0_i32, %c0_i32_0, %c0_i32_1 : i32, i32, i32
  }
  func.func @transform_3(%arg0: i32) -> (i32, i32) {
    %c0_i32 = arith.constant 0 : i32
    %c0_i32_0 = arith.constant 0 : i32
    return %arg0, %c0_i32 : i32, i32
  }
}

</mosaic_0001>

<llo_original>
// kernel: tpu_custom_call.1
$region0: #{tpu_custom_call.1}
  #allocation0 [shape = 'u32[]', space=smem, size = 0x4, offset = 0x4, fixed_abs, tag = 'smem constant byte address 0x4 - core index']
  #allocation1 [shape = 'u32[144,128]{1,0:T(1,128)}', space=vmem, size = 0x12000, scoped, tag = 'internal scratch']
  %s0 = inlined_call_operand.hbm [shape: f32[8,32], index: 0, kind: input, shape index: {}]
  %s1 = inlined_call_operand.hbm [shape: f32[3,128,128], index: 1, kind: input, shape index: {}]
  %s2 = inlined_call_operand.vmem [shape: f32[3,1,128], index: 2, kind: input, shape index: {}]
  %s3 = inlined_call_operand.hbm [shape: f32[8,128], index: 3, kind: output, shape index: {}]
  %s4 = sld [smem:[#allocation0]]
  $region30: #{tpu_custom_call.1} parent=0
    _
  %s6 = ssub.s32 1, %s4
  %s7 = scalar_select 0, %s6, %s4
  $region1: #{tpu_custom_call.1} parent=0
    #allocation2 [shape = 'u8[4096]{0}', space=vmem, size = 0x1000, scoped, tag = 'input window, operand 0, single buffered']
    #allocation3 [shape = 's32[1]{0}', space=sflag, size = 0x4, scoped, tag = 'scoped memory for tpu_custom_call.1']
    #allocation4 [shape = 's32[1]{0}', space=sflag, size = 0x4, scoped, tag = 'scoped memory for tpu_custom_call.1']
    #allocation5 [shape = 'u8[196608]{0}', space=vmem, size = 0x30000, scoped, tag = 'input window, operand 1, single buffered']
    #allocation6 [shape = 's32[1]{0}', space=sflag, size = 0x4, scoped, tag = 'scoped memory for tpu_custom_call.1']
    #allocation7 [shape = 'u8[4096]{0}', space=vmem, size = 0x1000, scoped, tag = 'output window, operand 0, single buffered']
    %8 = vsyncpa [#allocation3], 0
    %9 = vsyncpa [#allocation6], 0
    %10 = vsyncpa [#allocation4], 0
    // Predicated region
    $region2: #{tpu_custom_call.1} parent=1 // pred_check
      _
    $region3: #{tpu_custom_call.1} parent=1 // pred_check_branch
      %12 = sbr.rel (0) target = $region5
    $region4: #{tpu_custom_call.1} parent=1 // pred_region
      %s14 = ssub.s32 128, 128
      %15 = vsyncadd [#allocation3], %s14
      %s17 = sshll.u32 [#allocation2], 4
      %s18 = int_to_ptr.vmem [resolvable:$true] %s17
      %20 = dma.hbm_to_vmem [thread:$0]  %s0, 128, %s18, [#allocation3]
    $region5: #{tpu_custom_call.1} parent=1 // pred_fallthru
      _
    // Predicated region
    $region6: #{tpu_custom_call.1} parent=1 // pred_check
      _
    $region7: #{tpu_custom_call.1} parent=1 // pred_check_branch
      %22 = sbr.rel (0) target = $region9
    $region8: #{tpu_custom_call.1} parent=1 // pred_region
      %s24 = ssub.s32 6144, 6144
      %25 = vsyncadd [#allocation6], %s24
      %s26 = sshll.u32 [#allocation5], 4
      %s27 = int_to_ptr.vmem [resolvable:$true] %s26
      %32 = dma.hbm_to_vmem [thread:$0]  %s1, 6144, %s27, [#allocation6], 128, 128, 8
    $region9: #{tpu_custom_call.1} parent=1 // pred_fallthru
      _
    // Predicated region
    $region10: #{tpu_custom_call.1} parent=1 // pred_check
      _
    $region11: #{tpu_custom_call.1} parent=1 // pred_check_branch
      %34 = sbr.rel (0) target = $region13
    $region12: #{tpu_custom_call.1} parent=1 // pred_region
      _
    $region13: #{tpu_custom_call.1} parent=1 // pred_fallthru
      _
    // Predicated region
    $region14: #{tpu_custom_call.1} parent=1 // pred_check
      _
    $region15: #{tpu_custom_call.1} parent=1 // pred_check_branch
      %36 = sbr.rel (0) target = $region17
    $region16: #{tpu_custom_call.1} parent=1 // pred_region
      %37 = dma.done [#allocation3], 128
    $region17: #{tpu_custom_call.1} parent=1 // pred_fallthru
      _
    // Predicated region
    $region18: #{tpu_custom_call.1} parent=1 // pred_check
      _
    $region19: #{tpu_custom_call.1} parent=1 // pred_check_branch
      %39 = sbr.rel (0) target = $region21
    $region20: #{tpu_custom_call.1} parent=1 // pred_region
      %40 = dma.done [#allocation6], 6144
    $region21: #{tpu_custom_call.1} parent=1 // pred_fallthru
      _
    %v41 = vld [vmem:[#allocation2] sm:$0xff]
    %v42 = vld [vmem:[#allocation5] sm:$0xff]
    %v43 = vld [vmem:[#allocation5 + $0x8] sm:$0xff]
    %v44 = vld [vmem:[#allocation5 + $0x10] sm:$0xff]
    %v45 = vld [vmem:[#allocation5 + $0x18] sm:$0xff]
    %v46 = vld [vmem:[%s2] sm:$0x1]
    %v48 = vlaneseq
    %v49 = vshrl.u32 %v48, 7
    %v50 = vsub.s32 0, %v49
    %v51 = vrot.slane %v46, %v50
    %vm53 = vcmask 261120
    %v55 = vsel %vm53, %v41, 0
    %57 = vmatprep.subr.mxu0 0.0
    %58 = vmatpush1.msra.mxu0 %v42
    %59 = vmatprep.subr.mxu0 0.0
    %60 = vmatpush1.msra.mxu0 %v43
    %61 = vmatprep.subr.mxu0 0.0
    %62 = vmatpush1.msra.mxu0 %v44
    %63 = vmatprep.subr.mxu0 0.0
    %64 = vmatpush1.msra.mxu0 %v45
    %65 = vmatprep.subr.mxu0 0.0
    %66 = vmatpush1.msra.mxu0 0.0
    %67 = vmatprep.subr.mxu0 0.0
    %68 = vmatpush1.msra.mxu0 0.0
    %69 = vmatprep.subr.mxu0 0.0
    %70 = vmatpush1.msra.mxu0 0.0
    %71 = vmatprep.subr.mxu0 0.0
    %72 = vmatpush1.msra.mxu0 0.0
    %73 = vmatprep.subr.mxu0 0.0
    %74 = vmatpush1.msra.mxu0 0.0
    %75 = vmatprep.subr.mxu0 0.0
    %76 = vmatpush1.msra.mxu0 0.0
    %77 = vmatprep.subr.mxu0 0.0
    %78 = vmatpush1.msra.mxu0 0.0
    %79 = vmatprep.subr.mxu0 0.0
    %80 = vmatpush1.msra.mxu0 0.0
    %81 = vmatprep.subr.mxu0 0.0
    %82 = vmatpush1.msra.mxu0 0.0
    %83 = vmatprep.subr.mxu0 0.0
    %84 = vmatpush1.msra.mxu0 0.0
    %85 = vmatprep.subr.mxu0 0.0
    %86 = vmatpush1.msra.mxu0 0.0
    %87 = vmatprep.subr.mxu0 0.0
    %88 = vmatpush1.msra.mxu0 0.0
    %89 = vmatprep.subr.mxu0 0.0
    %90 = vmatpush1.msra.mxu0 0.0
    %91 = vmatprep.subr.mxu0 0.0
    %92 = vmatpush1.msra.mxu0 0.0
    %93 = vmatprep.subr.mxu0 0.0
    %94 = vmatpush1.msra.mxu0 0.0
    %95 = vmatprep.subr.mxu0 0.0
    %96 = vmatpush1.msra.mxu0 0.0
    %97 = vmatprep.subr.mxu0 0.0
    %98 = vmatpush1.msra.mxu0 0.0
    %99 = vmatprep.subr.mxu0 0.0
    %100 = vmatpush1.msra.mxu0 0.0
    %101 = vmatprep.subr.mxu0 0.0
    %102 = vmatpush1.msra.mxu0 0.0
    %103 = vmatprep.subr.mxu0 0.0
    %104 = vmatpush1.msra.mxu0 0.0
    %105 = vmatprep.subr.mxu0 0.0
    %106 = vmatpush1.msra.mxu0 0.0
    %107 = vmatprep.subr.mxu0 0.0
    %108 = vmatpush1.msra.mxu0 0.0
    %109 = vmatprep.subr.mxu0 0.0
    %110 = vmatpush1.msra.mxu0 0.0
    %111 = vmatprep.subr.mxu0 0.0
    %112 = vmatpush1.msra.mxu0 0.0
    %113 = vmatprep.subr.mxu0 0.0
    %114 = vmatpush1.msra.mxu0 0.0
    %115 = vmatprep.subr.mxu0 0.0
    %116 = vmatpush1.msra.mxu0 0.0
    %117 = vmatprep.subr.mxu0 0.0
    %118 = vmatpush1.msra.mxu0 0.0
    %119 = vmatprep.subr.mxu0 0.0
    %120 = vmatpush1.msra.mxu0 0.0
    %121 = vmatprep.mubr.f32.mxu0 0.0
    %122 = vmatmul.mubr.f32.gmra.mrb[0].mxu0 %v55
    %v123 = vpop.f32.mrb[0].mxu0
    %v124 = vadd.f32 %v51, %v123
    %v125 = vpop.f32.mrb[0].mxu0
    %126 = vdwg.mxu0
    %v127 = vmul.f32 %v124, 0.01
    %v128 = vmax.f32 %v124, %v127
    %s129 = scalar_lea.vmem [#allocation5], 128
    %v130 = vld [vmem:[%s129] sm:$0xff]
    %v131 = vld [vmem:[%s129 + $0x8] sm:$0xff]
    %v132 = vld [vmem:[%s129 + $0x10] sm:$0xff]
    %v133 = vld [vmem:[%s129 + $0x18] sm:$0xff]
    %v134 = vld [vmem:[%s129 + $0x20] sm:$0xff]
    %v135 = vld [vmem:[%s129 + $0x28] sm:$0xff]
    %v136 = vld [vmem:[%s129 + $0x30] sm:$0xff]
    %v137 = vld [vmem:[%s129 + $0x38] sm:$0xff]
    %v138 = vld [vmem:[%s129 + $0x40] sm:$0xff]
    %v139 = vld [vmem:[%s129 + $0x48] sm:$0xff]
    %v140 = vld [vmem:[%s129 + $0x50] sm:$0xff]
    %v141 = vld [vmem:[%s129 + $0x58] sm:$0xff]
    %v142 = vld [vmem:[%s129 + $0x60] sm:$0xff]
    %v143 = vld [vmem:[%s129 + $0x68] sm:$0xff]
    %v144 = vld [vmem:[%s129 + $0x70] sm:$0xff]
    %v145 = vld [vmem:[%s129 + $0x78] sm:$0xff]
    %s146 = scalar_lea.vmem %s2, 1
    %v147 = vld [vmem:[%s146] sm:$0x1]
    %v149 = vlaneseq
    %v150 = vshrl.u32 %v149, 7
    %v151 = vsub.s32 0, %v150
    %v152 = vrot.slane %v147, %v151
    %154 = vmatprep.subr.mxu0 0.0
    %155 = vmatpush1.msra.mxu0 %v130
    %156 = vmatprep.subr.mxu0 0.0
    %157 = vmatpush1.msra.mxu0 %v131
    %158 = vmatprep.subr.mxu0 0.0
    %159 = vmatpush1.msra.mxu0 %v132
    %160 = vmatprep.subr.mxu0 0.0
    %161 = vmatpush1.msra.mxu0 %v133
    %162 = vmatprep.subr.mxu0 0.0
    %163 = vmatpush1.msra.mxu0 %v134
    %164 = vmatprep.subr.mxu0 0.0
    %165 = vmatpush1.msra.mxu0 %v135
    %166 = vmatprep.subr.mxu0 0.0
    %167 = vmatpush1.msra.mxu0 %v136
    %168 = vmatprep.subr.mxu0 0.0
    %169 = vmatpush1.msra.mxu0 %v137
    %170 = vmatprep.subr.mxu0 0.0
    %171 = vmatpush1.msra.mxu0 %v138
    %172 = vmatprep.subr.mxu0 0.0
    %173 = vmatpush1.msra.mxu0 %v139
    %174 = vmatprep.subr.mxu0 0.0
    %175 = vmatpush1.msra.mxu0 %v140
    %176 = vmatprep.subr.mxu0 0.0
    %177 = vmatpush1.msra.mxu0 %v141
    %178 = vmatprep.subr.mxu0 0.0
    %179 = vmatpush1.msra.mxu0 %v142
    %180 = vmatprep.subr.mxu0 0.0
    %181 = vmatpush1.msra.mxu0 %v143
    %182 = vmatprep.subr.mxu0 0.0
    %183 = vmatpush1.msra.mxu0 %v144
    %184 = vmatprep.subr.mxu0 0.0
    %185 = vmatpush1.msra.mxu0 %v145
    %186 = vmatprep.subr.mxu0 0.0
    %187 = vmatpush1.msra.mxu0 0.0
    %188 = vmatprep.subr.mxu0 0.0
    %189 = vmatpush1.msra.mxu0 0.0
    %190 = vmatprep.subr.mxu0 0.0
    %191 = vmatpush1.msra.mxu0 0.0
    %192 = vmatprep.subr.mxu0 0.0
    %193 = vmatpush1.msra.mxu0 0.0
    %194 = vmatprep.subr.mxu0 0.0
    %195 = vmatpush1.msra.mxu0 0.0
    %196 = vmatprep.subr.mxu0 0.0
    %197 = vmatpush1.msra.mxu0 0.0
    %198 = vmatprep.subr.mxu0 0.0
    %199 = vmatpush1.msra.mxu0 0.0
    %200 = vmatprep.subr.mxu0 0.0
    %201 = vmatpush1.msra.mxu0 0.0
    %202 = vmatprep.subr.mxu0 0.0
    %203 = vmatpush1.msra.mxu0 0.0
    %204 = vmatprep.subr.mxu0 0.0
    %205 = vmatpush1.msra.mxu0 0.0
    %206 = vmatprep.subr.mxu0 0.0
    %207 = vmatpush1.msra.mxu0 0.0
    %208 = vmatprep.subr.mxu0 0.0
    %209 = vmatpush1.msra.mxu0 0.0
    %210 = vmatprep.subr.mxu0 0.0
    %211 = vmatpush1.msra.mxu0 0.0
    %212 = vmatprep.subr.mxu0 0.0
    %213 = vmatpush1.msra.mxu0 0.0
    %214 = vmatprep.subr.mxu0 0.0
    %215 = vmatpush1.msra.mxu0 0.0
    %216 = vmatprep.subr.mxu0 0.0
    %217 = vmatpush1.msra.mxu0 0.0
    %218 = vmatprep.mubr.f32.mxu0 0.0
    %219 = vmatmul.mubr.f32.gmra.mrb[0].mxu0 %v128
    %v220 = vpop.f32.mrb[0].mxu0
    %v221 = vadd.f32 %v152, %v220
    %v222 = vpop.f32.mrb[0].mxu0
    %223 = vdwg.mxu0
    %v224 = vmul.f32 %v221, 0.01
    %v225 = vmax.f32 %v221, %v224
    %s226 = scalar_lea.vmem [#allocation5], 256
    %v227 = vld [vmem:[%s226] sm:$0xff]
    %v228 = vld [vmem:[%s226 + $0x8] sm:$0xff]
    %v229 = vld [vmem:[%s226 + $0x10] sm:$0xff]
    %v230 = vld [vmem:[%s226 + $0x18] sm:$0xff]
    %v231 = vld [vmem:[%s226 + $0x20] sm:$0xff]
    %v232 = vld [vmem:[%s226 + $0x28] sm:$0xff]
    %v233 = vld [vmem:[%s226 + $0x30] sm:$0xff]
    %v234 = vld [vmem:[%s226 + $0x38] sm:$0xff]
    %v235 = vld [vmem:[%s226 + $0x40] sm:$0xff]
    %v236 = vld [vmem:[%s226 + $0x48] sm:$0xff]
    %v237 = vld [vmem:[%s226 + $0x50] sm:$0xff]
    %v238 = vld [vmem:[%s226 + $0x58] sm:$0xff]
    %v239 = vld [vmem:[%s226 + $0x60] sm:$0xff]
    %v240 = vld [vmem:[%s226 + $0x68] sm:$0xff]
    %v241 = vld [vmem:[%s226 + $0x70] sm:$0xff]
    %v242 = vld [vmem:[%s226 + $0x78] sm:$0xff]
    %s243 = scalar_lea.vmem %s2, 2
    %v244 = vld [vmem:[%s243] sm:$0x1]
    %v246 = vlaneseq
    %v247 = vshrl.u32 %v246, 7
    %v248 = vsub.s32 0, %v247
    %v249 = vrot.slane %v244, %v248
    %251 = vmatprep.subr.mxu0 0.0
    %252 = vmatpush1.msra.mxu0 %v227
    %253 = vmatprep.subr.mxu0 0.0
    %254 = vmatpush1.msra.mxu0 %v228
    %255 = vmatprep.subr.mxu0 0.0
    %256 = vmatpush1.msra.mxu0 %v229
    %257 = vmatprep.subr.mxu0 0.0
    %258 = vmatpush1.msra.mxu0 %v230
    %259 = vmatprep.subr.mxu0 0.0
    %260 = vmatpush1.msra.mxu0 %v231
    %261 = vmatprep.subr.mxu0 0.0
    %262 = vmatpush1.msra.mxu0 %v232
    %263 = vmatprep.subr.mxu0 0.0
    %264 = vmatpush1.msra.mxu0 %v233
    %265 = vmatprep.subr.mxu0 0.0
    %266 = vmatpush1.msra.mxu0 %v234
    %267 = vmatprep.subr.mxu0 0.0
    %268 = vmatpush1.msra.mxu0 %v235
    %269 = vmatprep.subr.mxu0 0.0
    %270 = vmatpush1.msra.mxu0 %v236
    %271 = vmatprep.subr.mxu0 0.0
    %272 = vmatpush1.msra.mxu0 %v237
    %273 = vmatprep.subr.mxu0 0.0
    %274 = vmatpush1.msra.mxu0 %v238
    %275 = vmatprep.subr.mxu0 0.0
    %276 = vmatpush1.msra.mxu0 %v239
    %277 = vmatprep.subr.mxu0 0.0
    %278 = vmatpush1.msra.mxu0 %v240
    %279 = vmatprep.subr.mxu0 0.0
    %280 = vmatpush1.msra.mxu0 %v241
    %281 = vmatprep.subr.mxu0 0.0
    %282 = vmatpush1.msra.mxu0 %v242
    %283 = vmatprep.subr.mxu0 0.0
    %284 = vmatpush1.msra.mxu0 0.0
    %285 = vmatprep.subr.mxu0 0.0
    %286 = vmatpush1.msra.mxu0 0.0
    %287 = vmatprep.subr.mxu0 0.0
    %288 = vmatpush1.msra.mxu0 0.0
    %289 = vmatprep.subr.mxu0 0.0
    %290 = vmatpush1.msra.mxu0 0.0
    %291 = vmatprep.subr.mxu0 0.0
    %292 = vmatpush1.msra.mxu0 0.0
    %293 = vmatprep.subr.mxu0 0.0
    %294 = vmatpush1.msra.mxu0 0.0
    %295 = vmatprep.subr.mxu0 0.0
    %296 = vmatpush1.msra.mxu0 0.0
    %297 = vmatprep.subr.mxu0 0.0
    %298 = vmatpush1.msra.mxu0 0.0
    %299 = vmatprep.subr.mxu0 0.0
    %300 = vmatpush1.msra.mxu0 0.0
    %301 = vmatprep.subr.mxu0 0.0
    %302 = vmatpush1.msra.mxu0 0.0
    %303 = vmatprep.subr.mxu0 0.0
    %304 = vmatpush1.msra.mxu0 0.0
    %305 = vmatprep.subr.mxu0 0.0
    %306 = vmatpush1.msra.mxu0 0.0
    %307 = vmatprep.subr.mxu0 0.0
    %308 = vmatpush1.msra.mxu0 0.0
    %309 = vmatprep.subr.mxu0 0.0
    %310 = vmatpush1.msra.mxu0 0.0
    %311 = vmatprep.subr.mxu0 0.0
    %312 = vmatpush1.msra.mxu0 0.0
    %313 = vmatprep.subr.mxu0 0.0
    %314 = vmatpush1.msra.mxu0 0.0
    %315 = vmatprep.mubr.f32.mxu0 0.0
    %316 = vmatmul.mubr.f32.gmra.mrb[0].mxu0 %v225
    %v317 = vpop.f32.mrb[0].mxu0
    %v318 = vadd.f32 %v249, %v317
    %v319 = vpop.f32.mrb[0].mxu0
    %320 = vdwg.mxu0
    %321 = vst [vmem:[#allocation7] sm:$0xff] %v318
    // Predicated region
    $region22: #{tpu_custom_call.1} parent=1 // pred_check
      _
    $region23: #{tpu_custom_call.1} parent=1 // pred_check_branch
      %323 = sbr.rel (0) target = $region25
    $region24: #{tpu_custom_call.1} parent=1 // pred_region
      %s325 = ssub.s32 128, 128
      %326 = vsyncadd [#allocation4], %s325
      %s328 = sshll.u32 [#allocation7], 4
      %s329 = int_to_ptr.vmem [resolvable:$true] %s328
      %331 = dma.vmem_to_hbm [thread:$0]  %s329, 128, %s3, [#allocation4]
    $region25: #{tpu_custom_call.1} parent=1 // pred_fallthru
      _
    // Predicated region
    $region26: #{tpu_custom_call.1} parent=1 // pred_check
      _
    $region27: #{tpu_custom_call.1} parent=1 // pred_check_branch
      %333 = sbr.rel (0) target = $region29
    $region28: #{tpu_custom_call.1} parent=1 // pred_region
      %334 = dma.done [#allocation4], 128
    $region29: #{tpu_custom_call.1} parent=1 // pred_fallthru
      _
    %335 = vsyncpa [#allocation3], 1
    %336 = vsyncpa [#allocation6], 1
    %337 = vsyncpa [#allocation4], 1

</llo_original>
